<compile_context>
chip_gen: v6e
topology: v6e:2x2x1
jax: 0.10.0
libtpu: 0.0.40
codegen_flags: <defaults>
</compile_context>

<pallas_src>
import jax
import jax.numpy as jnp
from jax.experimental import pallas as pl
from jax.experimental.pallas import tpu as pltpu

LANES = 128
SUBLANES = 8


def _hw_config():
    """Trace-time hardware query -> (max_row_tile, splits_hw, vmem_capacity)."""
    kind = ""
    try:
        kind = jax.devices()[0].device_kind.lower()
    except Exception:
        pass
    is_v7 = "v7" in kind

    vmem_cap = None
    try:
        vmem_cap = int(pltpu.get_tpu_info().vmem_capacity_bytes)
    except Exception:
        vmem_cap = None
    if vmem_cap is None or vmem_cap <= 0:
        vmem_cap = (64 << 20) if is_v7 else (128 << 20)

    # Per-step input buffering = 2 inputs x 2 pipeline buffers x row_tile x 128 x 4B.
    if vmem_cap >= (100 << 20):
        max_row_tile = 16384   # 32 MiB of double-buffered f32 input (v5e/v6e)
    else:
        max_row_tile = 8192    # 16 MiB, fits v7x's 64 MiB VMEM comfortably

    splits_hw = 2 if is_v7 else 1   # 2 TensorCores only on v7x
    return max_row_tile, splits_hw, vmem_cap


def _make_mse_kernel(row_tile, acc_rows, tiles_per_split, full_tiles, tail_rows):
    """Builds the reduction kernel.

    row_tile:        rows per grid step (block sublane extent).
    acc_rows:        rows of the register-resident accumulator (None => tiny
                     single-tile path, whole-block fold).
    tiles_per_split: steps along the reduction ("arbitrary") grid axis.
    full_tiles:      number of tiles that are completely valid (unmasked path).
    tail_rows:       valid rows in the ragged last tile (0 => none).
    """

    def kernel(pred_ref, real_ref, out_ref):
        c = pl.program_id(0)           # core split ("parallel")
        i = pl.program_id(1)           # reduction steps ("arbitrary")
        t = c * tiles_per_split + i    # logical tile index

        @pl.when(i == 0)
        def _init():
            out_ref[...] = jnp.zeros_like(out_ref)

        if acc_rows is None:
            # Tiny single-tile case (rows not a multiple of 8, full-dim block).
            @pl.when(t < full_tiles)
            def _tiny():
                d = real_ref[...].astype(jnp.float32) - pred_ref[...].astype(jnp.float32)
                out_ref[...] += (d * d).sum(axis=0, keepdims=True)
            return

        def chunk_sq(k):
            start = pl.multiple_of(k * acc_rows, acc_rows)
            a = real_ref[pl.ds(start, acc_rows), :].astype(jnp.float32)
            b = pred_ref[pl.ds(start, acc_rows), :].astype(jnp.float32)
            d = a - b
            return d * d

        # Hot path: fully-valid tiles -> no mask, register-resident accumulator.
        @pl.when(t < full_tiles)
        def _full():
            nchunks = row_tile // acc_rows

            def body(k, acc):
                return acc + chunk_sq(k)

            out_ref[...] += jax.lax.fori_loop(
                0, nchunks, body, jnp.zeros((acc_rows, LANES), jnp.float32))

        if tail_rows:
            # Cold path: the single ragged last tile.  Rows past `tail_rows`
            # hold undefined (stale) VMEM data and are zeroed before folding.
            @pl.when(t == full_tiles)
            def _ragged():
                nchunks = pl.cdiv(tail_rows, acc_rows)

                def body(k, acc):
                    rid = k * acc_rows + jax.lax.broadcasted_iota(
                        jnp.int32, (acc_rows, LANES), 0)
                    return acc + jnp.where(rid < tail_rows, chunk_sq(k), 0.0)

                out_ref[...] += jax.lax.fori_loop(
                    0, nchunks, body, jnp.zeros((acc_rows, LANES), jnp.float32))

        # Tiles with t >= num_tiles (over-covered steps of an uneven split)
        # fall through both pl.when branches and contribute nothing.

    return kernel


def mse_pallas(pred, real, _max_row_tile=None, _splits=None):
    """mse = sum((real - pred)^2) / numel, matching the torch reference."""
    assert pred.shape == real.shape, (pred.shape, real.shape)
    n = pred.size
    if n == 0:
        return jnp.float32(float("nan"))   # 0/0 of the torch reference

    max_row_tile_hw, splits_hw, vmem_cap = _hw_config()
    max_row_tile = _max_row_tile if _max_row_tile is not None else max_row_tile_hw

    p = pred.reshape(-1)
    r = real.reshape(-1)

    # Fold any sub-128-element lane tail outside the kernel (tiny jnp reduce)
    # so neither operand is ever padded / round-tripped through HBM.
    lane_tail = n % LANES
    bulk = n - lane_tail
    if lane_tail:
        tp = p[bulk:].astype(jnp.float32)
        tr = r[bulk:].astype(jnp.float32)
        td = tr - tp
        tail_sum = jnp.sum(td * td)
        pb, rb = p[:bulk], r[:bulk]
    else:
        tail_sum = jnp.float32(0.0)
        pb, rb = p, r

    if bulk == 0:
        return tail_sum / jnp.float32(n)

    rows = bulk // LANES
    pb = pb.reshape(rows, LANES)   # free bitcast reshape (lane-dense slab)
    rb = rb.reshape(rows, LANES)

    # --- Tile selection --------------------------------------------------
    itemsize = pred.dtype.itemsize
    sub_mult = SUBLANES * max(1, 4 // max(1, itemsize))   # 8/16/32 for f32/bf16/i8
    if rows <= max_row_tile:
        row_tile = rows                           # full-dim block (single tile)
    else:
        row_tile = max(sub_mult, (max_row_tile // sub_mult) * sub_mult)

    num_tiles = pl.cdiv(rows, row_tile)
    full_tiles = rows // row_tile
    tail_rows = rows - full_tiles * row_tile      # valid rows of ragged tile

    acc_rows = None
    for cand in (64, 32, 16, 8):
        if row_tile % cand == 0:
            acc_rows = cand
            break
    out_rows = acc_rows if acc_rows is not None else 1

    # --- Core split (2 TensorCores on v7x only) ---------------------------
    if _splits is not None:
        splits = max(1, min(_splits, num_tiles))
    else:
        splits = splits_hw if num_tiles >= 2 * splits_hw else 1
    tiles_per_split = pl.cdiv(num_tiles, splits)

    def in_map(c, i):
        t = c * tiles_per_split + i
        # Clamp over-covered steps onto a valid block; they never accumulate.
        return (jnp.minimum(t, num_tiles - 1), 0)

    kernel = _make_mse_kernel(row_tile, acc_rows, tiles_per_split,
                              full_tiles, tail_rows)

    # VMEM budget: 2 inputs x 2 pipeline buffers + headroom, within capacity.
    needed_in = 2 * 2 * row_tile * LANES * itemsize
    vmem_limit = int(min(max(needed_in + (16 << 20), 32 << 20),
                         max(vmem_cap - (16 << 20), 32 << 20)))

    partials = pl.pallas_call(
        kernel,
        out_shape=jax.ShapeDtypeStruct((splits * out_rows, LANES), jnp.float32),
        grid_spec=pl.GridSpec(
            grid=(splits, tiles_per_split),
            in_specs=[
                pl.BlockSpec((row_tile, LANES), in_map),
                pl.BlockSpec((row_tile, LANES), in_map),
            ],
            out_specs=pl.BlockSpec((out_rows, LANES), lambda c, i: (c, 0)),
        ),
        compiler_params=pltpu.CompilerParams(
            dimension_semantics=("parallel", "arbitrary"),
            vmem_limit_bytes=vmem_limit,
        ),
        cost_estimate=pl.CostEstimate(
            flops=3 * n,
            transcendentals=0,
            bytes_accessed=2 * n * itemsize,
        ),
    )(pb, rb)

    # Single tiny cross-lane reduction + divide, outside the hot loop.
    return (jnp.sum(partials) + tail_sum) / jnp.float32(n)


if __name__ == "__main__":
    keys = jax.random.split(jax.random.PRNGKey(0), 8)

    # Small NCHW-like shape consistent with typical use of this loss.
    pred = jax.random.normal(keys[0], (2, 4, 16, 16), dtype=jnp.float32)
    real = jax.random.normal(keys[1], (2, 4, 16, 16), dtype=jnp.float32)
    mse = mse_pallas(pred, real)
    jax.block_until_ready(mse)
    ref = jnp.mean((real - pred) ** 2)
    assert jnp.allclose(mse, ref, rtol=1e-5, atol=1e-6), (mse, ref)

    # Ragged numel (n % 128 != 0): the <128-element lane tail is folded in jnp.
    a = jax.random.normal(keys[2], (3, 5, 7, 11), dtype=jnp.float32)
    b = jax.random.normal(keys[3], (3, 5, 7, 11), dtype=jnp.float32)
    got = mse_pallas(a, b)
    jax.block_until_ready(got)
    want = jnp.mean((b - a) ** 2)
    assert jnp.allclose(got, want, rtol=1e-5, atol=1e-6), (got, want)

    # Aligned medium input, single big tile.
    a = jax.random.normal(keys[4], (2, 4, 128, 160), dtype=jnp.float32)
    b = jax.random.normal(keys[5], (2, 4, 128, 160), dtype=jnp.float32)
    got = mse_pallas(a, b)
    jax.block_until_ready(got)
    want = jnp.mean((b - a) ** 2)
    assert jnp.allclose(got, want, rtol=1e-5, atol=1e-6), (got, want)

    # Multi-tile + ragged last tile + forced 2-way split (exercises the masked
    # cold path and the per-split accumulators on every TPU generation).
    a = jax.random.normal(keys[6], (25, 8, 128), dtype=jnp.float32)
    b = jax.random.normal(keys[7], (25, 8, 128), dtype=jnp.float32)
    want = jnp.mean((b - a) ** 2)
    got = mse_pallas(a, b, _max_row_tile=64, _splits=2)
    jax.block_until_ready(got)
    assert jnp.allclose(got, want, rtol=1e-5, atol=1e-6), (got, want)

    # Odd number of tiles with a 2-way split (over-covered clamped step path).
    got = mse_pallas(a, b, _max_row_tile=72, _splits=2)
    jax.block_until_ready(got)
    assert jnp.allclose(got, want, rtol=1e-5, atol=1e-6), (got, want)

    print("KERNEL_OK")
</pallas_src>

<mosaic_0001>
module attributes {stable_mosaic.version = 11 : i64} {
  func.func @kernel(%arg0: i32, %arg1: i32, %arg2: memref<16x128xf32, #tpu.memory_space<vmem>>, %arg3: memref<16x128xf32, #tpu.memory_space<vmem>>, %arg4: memref<16x128xf32, #tpu.memory_space<vmem>>) attributes {dimension_semantics = [#tpu.dimension_semantics<parallel>, #tpu.dimension_semantics<arbitrary>], iteration_bounds = array<i64: 1, 1>, scalar_prefetch = 0 : i64, scratch_operands = 0 : i64, tpu.core_type = #tpu.core_type<tc>, window_params = [{transform_indices = @transform_0, window_bounds = array<i64: 16, 128>}, {transform_indices = @transform_1, window_bounds = array<i64: 16, 128>}, {transform_indices = @transform_2, window_bounds = array<i64: 16, 128>}]} {
    %c1_i32 = arith.constant 1 : i32
    %0 = arith.muli %arg0, %c1_i32 : i32
    %1 = arith.addi %0, %arg1 : i32
    %c0_i32 = arith.constant 0 : i32
    %2 = arith.cmpi eq, %arg1, %c0_i32 : i32
    %3 = arith.extui %2 : i1 to i32
    %c0_i32_0 = arith.constant 0 : i32
    %4 = arith.cmpi ne, %3, %c0_i32_0 : i32
    scf.if %4 {
      %cst = arith.constant 0.000000e+00 : f32
      %8 = vector.broadcast %cst : f32 to vector<16x128xf32>
      %c0 = arith.constant 0 : index
      %c0_3 = arith.constant 0 : index
      %9 = vector.load %arg4[%c0, %c0_3] : memref<16x128xf32, #tpu.memory_space<vmem>>, vector<16x128xf32>
      tpu.vector_store %arg4[%c0, %c0_3], %8 {strides = array<i32>} : memref<16x128xf32, #tpu.memory_space<vmem>>, vector<16x128xf32>,
    } else {
    }
    %c1_i32_1 = arith.constant 1 : i32
    %5 = arith.cmpi slt, %1, %c1_i32_1 : i32
    %6 = arith.extui %5 : i1 to i32
    %c0_i32_2 = arith.constant 0 : i32
    %7 = arith.cmpi ne, %6, %c0_i32_2 : i32
    scf.if %7 {
      %c0 = arith.constant 0 : index
      %c0_3 = arith.constant 0 : index
      %8 = vector.load %arg4[%c0, %c0_3] : memref<16x128xf32, #tpu.memory_space<vmem>>, vector<16x128xf32>
      %cst = arith.constant 0.000000e+00 : f32
      %9 = vector.broadcast %cst : f32 to vector<16x128xf32>
      %c0_i32_4 = arith.constant 0 : i32
      %c16_i32 = arith.constant 16 : i32
      %10 = arith.muli %c0_i32_4, %c16_i32 : i32
      %11 = tpu.assume_multiple %10, 16 : i32
      %12 = arith.index_cast %11 : i32 to index
      %c0_5 = arith.constant 0 : index
      %13 = vector.load %arg3[%12, %c0_5] : memref<16x128xf32, #tpu.memory_space<vmem>>, vector<16x128xf32>
      %14 = arith.index_cast %11 : i32 to index
      %c0_6 = arith.constant 0 : index
      %15 = vector.load %arg2[%14, %c0_6] : memref<16x128xf32, #tpu.memory_space<vmem>>, vector<16x128xf32>
      %16 = arith.subf %13, %15 : vector<16x128xf32>
      %17 = arith.mulf %16, %16 : vector<16x128xf32>
      %18 = arith.addf %9, %17 : vector<16x128xf32>
      %c1_i32_7 = arith.constant 1 : i32
      %19 = arith.addf %8, %18 : vector<16x128xf32>
      %c0_8 = arith.constant 0 : index
      %c0_9 = arith.constant 0 : index
      %20 = vector.load %arg4[%c0_8, %c0_9] : memref<16x128xf32, #tpu.memory_space<vmem>>, vector<16x128xf32>
      tpu.vector_store %arg4[%c0_8, %c0_9], %19 {strides = array<i32>} : memref<16x128xf32, #tpu.memory_space<vmem>>, vector<16x128xf32>,
    } else {
    }
    return
  }
  func.func @transform_0(%arg0: i32, %arg1: i32) -> (i32, i32) {
    %c1_i32 = arith.constant 1 : i32
    %0 = arith.muli %arg0, %c1_i32 : i32
    %1 = arith.addi %0, %arg1 : i32
    %c0_i32 = arith.constant 0 : i32
    %2 = arith.minsi %1, %c0_i32 : i32
    %c0_i32_0 = arith.constant 0 : i32
    %c0_i32_1 = arith.constant 0 : i32
    return %2, %c0_i32_0 : i32, i32
  }
  func.func @transform_1(%arg0: i32, %arg1: i32) -> (i32, i32) {
    %c1_i32 = arith.constant 1 : i32
    %0 = arith.muli %arg0, %c1_i32 : i32
    %1 = arith.addi %0, %arg1 : i32
    %c0_i32 = arith.constant 0 : i32
    %2 = arith.minsi %1, %c0_i32 : i32
    %c0_i32_0 = arith.constant 0 : i32
    %c0_i32_1 = arith.constant 0 : i32
    return %2, %c0_i32_0 : i32, i32
  }
  func.func @transform_2(%arg0: i32, %arg1: i32) -> (i32, i32) {
    %c0_i32 = arith.constant 0 : i32
    %c0_i32_0 = arith.constant 0 : i32
    return %arg0, %c0_i32 : i32, i32
  }
}

</mosaic_0001>

<llo_original>
// kernel: tpu_custom_call.1
$region0: #{tpu_custom_call.1}
  #allocation0 [shape = 'u32[]', space=smem, size = 0x4, offset = 0x4, fixed_abs, tag = 'smem constant byte address 0x4 - core index']
  #allocation1 [shape = 'u32[144,128]{1,0:T(1,128)}', space=vmem, size = 0x12000, scoped, tag = 'internal scratch']
  %s0 = inlined_call_operand.hbm [shape: f32[16,128], index: 0, kind: input, shape index: {}]
  %s1 = inlined_call_operand.hbm [shape: f32[16,128], index: 1, kind: input, shape index: {}]
  %s2 = inlined_call_operand.hbm [shape: f32[16,128], index: 2, kind: output, shape index: {}]
  %s3 = sld [smem:[#allocation0]]
  $region34: #{tpu_custom_call.1} parent=0
    _
  %s5 = ssub.s32 1, %s3
  %s6 = scalar_select 0, %s5, %s3
  $region1: #{tpu_custom_call.1} parent=0
    #allocation2 [shape = 'u8[8192]{0}', space=vmem, size = 0x2000, scoped, tag = 'input window, operand 0, single buffered']
    #allocation3 [shape = 's32[1]{0}', space=sflag, size = 0x4, scoped, tag = 'scoped memory for tpu_custom_call.1']
    #allocation4 [shape = 's32[1]{0}', space=sflag, size = 0x4, scoped, tag = 'scoped memory for tpu_custom_call.1']
    #allocation5 [shape = 'u8[8192]{0}', space=vmem, size = 0x2000, scoped, tag = 'input window, operand 1, single buffered']
    #allocation6 [shape = 's32[1]{0}', space=sflag, size = 0x4, scoped, tag = 'scoped memory for tpu_custom_call.1']
    #allocation7 [shape = 'u8[8192]{0}', space=vmem, size = 0x2000, scoped, tag = 'output window, operand 0, single buffered']
    %7 = vsyncpa [#allocation3], 0
    %8 = vsyncpa [#allocation6], 0
    %9 = vsyncpa [#allocation4], 0
    // Predicated region
    $region2: #{tpu_custom_call.1} parent=1 // pred_check
      _
    $region3: #{tpu_custom_call.1} parent=1 // pred_check_branch
      %11 = sbr.rel (0) target = $region5
    $region4: #{tpu_custom_call.1} parent=1 // pred_region
      %s12 = sadd.s32 0, 0
      %p13 = scmp.lt.s32.totalorder %s12, 0
      %s14 = scalar_select %p13, %s12, 0
      %s15 = smul.u32 2, %s14
      %s17 = ssub.s32 256, 256
      %18 = vsyncadd [#allocation3], %s17
      %s19 = smul.addr %s15, 128
      %s20 = scalar_lea.hbm %s0, %s19
      %s21 = sshll.u32 [#allocation2], 4
      %s22 = int_to_ptr.vmem [resolvable:$true] %s21
      %27 = dma.hbm_to_vmem [thread:$0]  %s20, 256, %s22, [#allocation3], 128, 128, 8
    $region5: #{tpu_custom_call.1} parent=1 // pred_fallthru
      _
    // Predicated region
    $region6: #{tpu_custom_call.1} parent=1 // pred_check
      _
    $region7: #{tpu_custom_call.1} parent=1 // pred_check_branch
      %29 = sbr.rel (0) target = $region9
    $region8: #{tpu_custom_call.1} parent=1 // pred_region
      %s30 = sadd.s32 0, 0
      %p31 = scmp.lt.s32.totalorder %s30, 0
      %s32 = scalar_select %p31, %s30, 0
      %s33 = smul.u32 2, %s32
      %s35 = ssub.s32 256, 256
      %36 = vsyncadd [#allocation6], %s35
      %s37 = smul.addr %s33, 128
      %s38 = scalar_lea.hbm %s1, %s37
      %s39 = sshll.u32 [#allocation5], 4
      %s40 = int_to_ptr.vmem [resolvable:$true] %s39
      %45 = dma.hbm_to_vmem [thread:$0]  %s38, 256, %s40, [#allocation6], 128, 128, 8
    $region9: #{tpu_custom_call.1} parent=1 // pred_fallthru
      _
    // Predicated region
    $region10: #{tpu_custom_call.1} parent=1 // pred_check
      _
    $region11: #{tpu_custom_call.1} parent=1 // pred_check_branch
      %47 = sbr.rel (0) target = $region13
    $region12: #{tpu_custom_call.1} parent=1 // pred_region
      %48 = dma.done [#allocation3], 256
    $region13: #{tpu_custom_call.1} parent=1 // pred_fallthru
      _
    // Predicated region
    $region14: #{tpu_custom_call.1} parent=1 // pred_check
      _
    $region15: #{tpu_custom_call.1} parent=1 // pred_check_branch
      %50 = sbr.rel (0) target = $region17
    $region16: #{tpu_custom_call.1} parent=1 // pred_region
      %51 = dma.done [#allocation6], 256
    $region17: #{tpu_custom_call.1} parent=1 // pred_fallthru
      _
    %s52 = sadd.s32 0, 0
    %p53 = scmp.lt.s32.totalorder %s52, 0
    %s54 = scalar_select %p53, %s52, 0
    %s55 = smul.u32 2, %s54
    %s56 = sadd.s32 0, 0
    %p57 = scmp.lt.s32.totalorder %s56, 0
    %s58 = scalar_select %p57, %s56, 0
    %s59 = smul.u32 2, %s58
    %s60 = sadd.s32 0, 0
    %p61 = scmp.eq.s32.totalorder 0, 0
    // Predicated region
    $region18: #{tpu_custom_call.1} parent=1 // pred_check
      %p62 = pneg %p61
    $region19: #{tpu_custom_call.1} parent=1 // pred_check_branch
      %64 = sbr.rel (%p62) target = $region21
    $region20: #{tpu_custom_call.1} parent=1 // pred_region
      %65 = vst [vmem:[#allocation7] sm:$0xff] 0.0
      %66 = vst [vmem:[#allocation7 + $0x8] sm:$0xff] 0.0
    $region21: #{tpu_custom_call.1} parent=1 // pred_fallthru
      _
    %p67 = scmp.lt.s32.totalorder %s60, 1
    // Predicated region
    $region22: #{tpu_custom_call.1} parent=1 // pred_check
      %p68 = pneg %p67
    $region23: #{tpu_custom_call.1} parent=1 // pred_check_branch
      %70 = sbr.rel (%p68) target = $region25
    $region24: #{tpu_custom_call.1} parent=1 // pred_region
      %v71 = vld [vmem:[#allocation7] sm:$0xff]
      %v72 = vld [vmem:[#allocation7 + $0x8] sm:$0xff]
      %v73 = vld [vmem:[#allocation5] sm:$0xff]
      %v74 = vld [vmem:[#allocation5 + $0x8] sm:$0xff]
      %v75 = vld [vmem:[#allocation2] sm:$0xff]
      %v76 = vld [vmem:[#allocation2 + $0x8] sm:$0xff]
      %v77 = vsub.f32 %v73, %v75
      %v78 = vsub.f32 %v74, %v76
      %v79 = vmul.f32 %v77, %v77
      %v80 = vmul.f32 %v78, %v78
      %v81 = vadd.f32 %v79, 0.0
      %v82 = vadd.f32 %v80, 0.0
      %v83 = vadd.f32 %v71, %v81
      %v84 = vadd.f32 %v72, %v82
      %85 = vst [vmem:[#allocation7] sm:$0xff] %v83
      %86 = vst [vmem:[#allocation7 + $0x8] sm:$0xff] %v84
    $region25: #{tpu_custom_call.1} parent=1 // pred_fallthru
      _
    // Predicated region
    $region26: #{tpu_custom_call.1} parent=1 // pred_check
      _
    $region27: #{tpu_custom_call.1} parent=1 // pred_check_branch
      %88 = sbr.rel (0) target = $region29
    $region28: #{tpu_custom_call.1} parent=1 // pred_region
      %s90 = ssub.s32 256, 256
      %91 = vsyncadd [#allocation4], %s90
      %s92 = sshll.u32 [#allocation7], 4
      %s93 = int_to_ptr.vmem [resolvable:$true] %s92
      %98 = dma.vmem_to_hbm [thread:$0]  %s93, 256, %s2, [#allocation4], 128, 128, 8
    $region29: #{tpu_custom_call.1} parent=1 // pred_fallthru
      _
    // Predicated region
    $region30: #{tpu_custom_call.1} parent=1 // pred_check
      _
    $region31: #{tpu_custom_call.1} parent=1 // pred_check_branch
      %100 = sbr.rel (0) target = $region33
    $region32: #{tpu_custom_call.1} parent=1 // pred_region
      %101 = dma.done [#allocation4], 256
    $region33: #{tpu_custom_call.1} parent=1 // pred_fallthru
      _
    %102 = vsyncpa [#allocation3], 1
    %103 = vsyncpa [#allocation6], 1
    %104 = vsyncpa [#allocation4], 1

</llo_original>
